<compile_context>
chip_gen: v5e
topology: v5e:2x2
jax: 0.10.0
libtpu: 0.0.40
codegen_flags: <defaults>
</compile_context>

<pallas_src>
import math
import functools

import jax
import jax.numpy as jnp
from jax.experimental import pallas as pl
from jax.experimental.pallas import tpu as pltpu


_MXU_DTYPE = jnp.bfloat16   # MXU input dtype (accumulation is always fp32)


def _round_up(x, m):
    return ((x + m - 1) // m) * m


def _pick_tile(dim, max_tile, align):
    """Pick a tile (multiple of `align`, <= max_tile) that divides the padded dim."""
    dp = _round_up(max(dim, align), align)
    t = min(max_tile, dp)
    t = _round_up(t, align)
    while dp % t:
        t -= align
    return t, dp


# ----------------------------------------------------------------------------
# Tiled linear kernel:  y = x @ w_t + b
# ----------------------------------------------------------------------------
def _linear_kernel(x_ref, w_ref, b_ref, o_ref, acc_ref):
    @pl.when(pl.program_id(2) == 0)
    def _():
        acc_ref[...] = jnp.zeros(acc_ref.shape, jnp.float32)

    acc_ref[...] += jnp.dot(x_ref[...], w_ref[...],
                            preferred_element_type=jnp.float32)

    @pl.when(pl.program_id(2) == pl.num_programs(2) - 1)
    def _():
        o_ref[...] = (acc_ref[...] + b_ref[...]).astype(o_ref.dtype)


def pallas_linear(x, w_t, b, out_dtype=jnp.float32, *, tm=256, tn=256, tk=512):
    """y = x @ w_t + b.  x: (M, K), w_t: (K, N) (pre-transposed), b: (N,)."""
    M, K = x.shape
    N = w_t.shape[1]

    tm, Mp = _pick_tile(M, tm, 8)
    tn, Np = _pick_tile(N, tn, 128)
    tk, Kp = _pick_tile(K, tk, 128)

    xp = x if (Mp == M and Kp == K) else jnp.pad(x, ((0, Mp - M), (0, Kp - K)))
    wp = w_t if (Kp == K and Np == N) else jnp.pad(w_t, ((0, Kp - K), (0, Np - N)))
    bp = (b if Np == N else jnp.pad(b, (0, Np - N))).astype(jnp.float32).reshape(1, Np)

    grid = (Mp // tm, Np // tn, Kp // tk)
    out = pl.pallas_call(
        _linear_kernel,
        out_shape=jax.ShapeDtypeStruct((Mp, Np), out_dtype),
        grid_spec=pltpu.PrefetchScalarGridSpec(
            num_scalar_prefetch=0,
            grid=grid,
            in_specs=[
                pl.BlockSpec((tm, tk), lambda i, j, kk: (i, kk)),
                pl.BlockSpec((tk, tn), lambda i, j, kk: (kk, j)),
                pl.BlockSpec((1, tn), lambda i, j, kk: (0, j)),
            ],
            out_specs=pl.BlockSpec((tm, tn), lambda i, j, kk: (i, j)),
            scratch_shapes=[pltpu.VMEM((tm, tn), jnp.float32)],
        ),
        compiler_params=pltpu.CompilerParams(
            dimension_semantics=("parallel", "parallel", "arbitrary")),
        cost_estimate=pl.CostEstimate(
            flops=2 * M * N * K,
            transcendentals=0,
            bytes_accessed=(M * K + K * N) * x.dtype.itemsize
                           + M * N * jnp.dtype(out_dtype).itemsize),
    )(xp, wp, bp)

    if Mp != M or Np != N:
        out = out[:M, :N]
    return out


# ----------------------------------------------------------------------------
# Flash-style multi-head attention kernel (all heads of one batch per step)
# ----------------------------------------------------------------------------
def _flash_mha_kernel(q_ref, k_ref, v_ref, o_ref, m_sc, l_sc, acc_sc,
                      *, num_heads, head_dim, scale, kv_len, kv_tile):
    ki = pl.program_id(2)

    @pl.when(ki == 0)
    def _():
        m_sc[...] = jnp.full(m_sc.shape, -jnp.inf, jnp.float32)
        l_sc[...] = jnp.zeros(l_sc.shape, jnp.float32)
        acc_sc[...] = jnp.zeros(acc_sc.shape, jnp.float32)

    q = q_ref[0]                       # (tq,  E) bf16
    k = k_ref[0]                       # (tkv, E) bf16
    v = v_ref[0]                       # (tkv, E) bf16
    tkv = k.shape[0]

    need_mask = (kv_len % kv_tile) != 0            # static python bool
    if need_mask:
        kv_pos = ki * kv_tile + jax.lax.broadcasted_iota(jnp.int32, (1, tkv), 1)
        neg_bias = jnp.where(kv_pos < kv_len, 0.0, -1e30).astype(jnp.float32)

    for h in range(num_heads):                     # unrolled: static head count
        cols = slice(h * head_dim, (h + 1) * head_dim)
        q_h, k_h, v_h = q[:, cols], k[:, cols], v[:, cols]

        # scores = q_h @ k_h^T  (fp32 accumulation on the MXU)
        s = jax.lax.dot_general(
            q_h, k_h, (((1,), (1,)), ((), ())),
            preferred_element_type=jnp.float32)
        if scale != 1.0:                           # scale is folded into w_q normally
            s = s * scale
        if need_mask:
            s = s + neg_bias                       # broadcast (1, tkv) additive mask

        m_prev = m_sc[h]                                     # (tq, 1)
        m_new = jnp.maximum(m_prev, jnp.max(s, axis=-1, keepdims=True))
        alpha = jnp.exp(m_prev - m_new)
        p = jnp.exp(s - m_new)                               # (tq, tkv) fp32
        l_sc[h] = alpha * l_sc[h] + jnp.sum(p, axis=-1, keepdims=True)
        acc_sc[h] = alpha * acc_sc[h] + jax.lax.dot_general(
            p.astype(v_h.dtype), v_h, (((1,), (0,)), ((), ())),
            preferred_element_type=jnp.float32)
        m_sc[h] = m_new

    @pl.when(ki == pl.num_programs(2) - 1)
    def _():
        outs = [acc_sc[h] * pl.reciprocal(l_sc[h], approx=True)
                for h in range(num_heads)]
        # lane-dense (tq, E) store
        o_ref[0] = jnp.concatenate(outs, axis=-1).astype(o_ref.dtype)


def pallas_flash_mha(q_bm, k_bm, v_bm, num_heads, *, scale=None, tq=256, tkv=256):
    """q_bm: (B, Lq, E), k_bm/v_bm: (B, Lk, E)  ->  (B, Lq, E)."""
    B, Lq, E = q_bm.shape
    Lk = k_bm.shape[1]
    hd = E // num_heads
    if scale is None:
        scale = 1.0 / math.sqrt(hd)

    tq_, Lqp = _pick_tile(Lq, tq, 8)
    tkv_, Lkp = _pick_tile(Lk, tkv, 8)

    if Lqp != Lq:
        q_bm = jnp.pad(q_bm, ((0, 0), (0, Lqp - Lq), (0, 0)))
    if Lkp != Lk:
        k_bm = jnp.pad(k_bm, ((0, 0), (0, Lkp - Lk), (0, 0)))
        v_bm = jnp.pad(v_bm, ((0, 0), (0, Lkp - Lk), (0, 0)))

    kernel = functools.partial(_flash_mha_kernel, num_heads=num_heads,
                               head_dim=hd, scale=scale, kv_len=Lk, kv_tile=tkv_)
    grid = (B, Lqp // tq_, Lkp // tkv_)

    out = pl.pallas_call(
        kernel,
        out_shape=jax.ShapeDtypeStruct((B, Lqp, E), q_bm.dtype),
        grid_spec=pltpu.PrefetchScalarGridSpec(
            num_scalar_prefetch=0,
            grid=grid,
            in_specs=[
                pl.BlockSpec((1, tq_, E), lambda b, qi, ki: (b, qi, 0)),
                pl.BlockSpec((1, tkv_, E), lambda b, qi, ki: (b, ki, 0)),
                pl.BlockSpec((1, tkv_, E), lambda b, qi, ki: (b, ki, 0)),
            ],
            out_specs=pl.BlockSpec((1, tq_, E), lambda b, qi, ki: (b, qi, 0)),
            scratch_shapes=[
                pltpu.VMEM((num_heads, tq_, 1), jnp.float32),   # running max
                pltpu.VMEM((num_heads, tq_, 1), jnp.float32),   # running sum
                pltpu.VMEM((num_heads, tq_, hd), jnp.float32),  # accumulator
            ],
        ),
        compiler_params=pltpu.CompilerParams(
            dimension_semantics=("parallel", "parallel", "arbitrary")),
        cost_estimate=pl.CostEstimate(
            flops=4 * B * Lq * Lk * E,
            transcendentals=B * num_heads * Lq * Lk,
            bytes_accessed=(B * Lq * E + 2 * B * Lk * E + B * Lq * E) * 2),
    )(q_bm, k_bm, v_bm)

    if Lqp != Lq:
        out = out[:, :Lq, :]
    return out


# ----------------------------------------------------------------------------
# Parameters (PyTorch layout) + one-time prepared (transposed / bf16) layout
# ----------------------------------------------------------------------------
def init_multihead_attention_params(key, embed_dim):
    """Mirror the module's __init__/_reset_parameters shapes."""
    k1, k2 = jax.random.split(key)
    limit = math.sqrt(6.0 / (embed_dim + 3 * embed_dim))      # xavier_uniform_
    in_proj_weight = jax.random.uniform(k1, (3 * embed_dim, embed_dim),
                                        jnp.float32, -limit, limit)
    in_proj_bias = jnp.zeros((3 * embed_dim,), jnp.float32)
    bound = math.sqrt(1.0 / embed_dim)
    out_proj_weight = jax.random.uniform(k2, (embed_dim, embed_dim),
                                         jnp.float32, -bound, bound)
    out_proj_bias = jnp.zeros((embed_dim,), jnp.float32)
    return {
        "in_proj_weight": in_proj_weight,
        "in_proj_bias": in_proj_bias,
        "out_proj_weight": out_proj_weight,
        "out_proj_bias": out_proj_bias,
    }


def prepare_params(params, num_heads):
    """Pre-transpose / cast projection weights ONCE (not per forward call).

    Folds the 1/sqrt(head_dim) attention scale into the q projection weights
    and bias, so the attention kernel does no per-element scaling.
    """
    w_in = params["in_proj_weight"]          # (3E, E)
    b_in = params["in_proj_bias"]            # (3E,)
    E = w_in.shape[1]
    hd = E // num_heads
    scale = 1.0 / math.sqrt(hd)
    cd = _MXU_DTYPE

    w_q = w_in[:E] * scale                   # scaled q projection
    b_q = b_in[:E] * scale
    w_kv = w_in[E:]
    b_kv = b_in[E:]
    w_in_scaled = jnp.concatenate([w_q, w_kv], axis=0)
    b_in_scaled = jnp.concatenate([b_q, b_kv], axis=0)

    return {
        "embed_dim": E,
        "num_heads": num_heads,
        "w_in_t": w_in_scaled.T.astype(cd),               # (E, 3E)
        "w_q_t": w_q.T.astype(cd),                        # (E, E)
        "w_kv_t": w_kv.T.astype(cd),                      # (E, 2E)
        "w_k_t": w_in[E:2 * E].T.astype(cd),
        "w_v_t": w_in[2 * E:].T.astype(cd),
        "b_in": b_in_scaled.astype(jnp.float32),
        "b_q": b_q.astype(jnp.float32),
        "b_kv": b_kv.astype(jnp.float32),
        "b_k": b_in[E:2 * E].astype(jnp.float32),
        "b_v": b_in[2 * E:].astype(jnp.float32),
        "w_out_t": params["out_proj_weight"].T.astype(cd),
        "b_out": params["out_proj_bias"].astype(jnp.float32),
    }


# ----------------------------------------------------------------------------
# Forward pass (mirrors MultiheadAttention.forward, _qkv_same_embed_dim path)
# ----------------------------------------------------------------------------
def multihead_attention_forward(prepared, q, k, v, num_heads):
    """q: (L, B, E), k/v: (Lk, B, E)  ->  (L, B, E)."""
    L, B, E = q.shape
    Lk = k.shape[0]
    assert E == prepared["embed_dim"] and E % num_heads == 0
    cd = _MXU_DTYPE

    same_qkv = (q is k) and (k is v)
    same_kv = k is v

    # Single entry transpose to batch-major; all following reshapes are free.
    q_bm = jnp.transpose(q, (1, 0, 2)).astype(cd)             # (B, L, E)
    if same_qkv:
        k_bm = v_bm = q_bm
    else:
        k_bm = jnp.transpose(k, (1, 0, 2)).astype(cd)
        v_bm = k_bm if same_kv else jnp.transpose(v, (1, 0, 2)).astype(cd)

    if same_qkv:
        # packed path: x read once, one wide (M, 3E) matmul.
        qkv = pallas_linear(q_bm.reshape(B * L, E), prepared["w_in_t"],
                            prepared["b_in"], out_dtype=cd).reshape(B, L, 3 * E)
        qp, kp, vp = qkv[..., :E], qkv[..., E:2 * E], qkv[..., 2 * E:]
    elif same_kv:
        qp = pallas_linear(q_bm.reshape(B * L, E), prepared["w_q_t"],
                           prepared["b_q"], out_dtype=cd).reshape(B, L, E)
        kv = pallas_linear(k_bm.reshape(B * Lk, E), prepared["w_kv_t"],
                           prepared["b_kv"], out_dtype=cd).reshape(B, Lk, 2 * E)
        kp, vp = kv[..., :E], kv[..., E:]
    else:
        qp = pallas_linear(q_bm.reshape(B * L, E), prepared["w_q_t"],
                           prepared["b_q"], out_dtype=cd).reshape(B, L, E)
        kp = pallas_linear(k_bm.reshape(B * Lk, E), prepared["w_k_t"],
                           prepared["b_k"], out_dtype=cd).reshape(B, Lk, E)
        vp = pallas_linear(v_bm.reshape(B * Lk, E), prepared["w_v_t"],
                           prepared["b_v"], out_dtype=cd).reshape(B, Lk, E)

    # scale already folded into the q projection -> scale=1.0 in the kernel
    attn = pallas_flash_mha(qp, kp, vp, num_heads, scale=1.0)  # (B, L, E) bf16

    out = pallas_linear(attn.reshape(B * L, E), prepared["w_out_t"],
                        prepared["b_out"], out_dtype=jnp.float32)
    return out.reshape(B, L, E).transpose(1, 0, 2)             # (L, B, E) fp32


# ----------------------------------------------------------------------------
# Pure-JAX fp32 reference (mirrors the PyTorch module exactly)
# ----------------------------------------------------------------------------
def _reference_forward(params, q, k, v, num_heads):
    L, B, E = q.shape
    Lk = k.shape[0]
    hd = E // num_heads
    w = params["in_proj_weight"]
    b = params["in_proj_bias"]
    qp = q @ w[:E].T + b[:E]
    kp = k @ w[E:2 * E].T + b[E:2 * E]
    vp = v @ w[2 * E:].T + b[2 * E:]
    qh = qp.reshape(L, B * num_heads, hd).transpose(1, 0, 2) / math.sqrt(hd)
    kh = kp.reshape(Lk, B * num_heads, hd).transpose(1, 0, 2)
    vh = vp.reshape(Lk, B * num_heads, hd).transpose(1, 0, 2)
    s = jnp.einsum("bqd,bkd->bqk", qh, kh)
    p = jax.nn.softmax(s, axis=-1)
    a = jnp.einsum("bqk,bkd->bqd", p, vh)
    a = a.transpose(1, 0, 2).reshape(L, B, E)
    return a @ params["out_proj_weight"].T + params["out_proj_bias"]


def _check(out, ref, name):
    assert out.shape == ref.shape, f"{name}: shape {out.shape} vs {ref.shape}"
    err = float(jnp.max(jnp.abs(out - ref)))
    rel = float(jnp.sqrt(jnp.sum((out - ref) ** 2)) /
                (jnp.sqrt(jnp.sum(ref ** 2)) + 1e-12))
    assert err < 1.5e-1 and rel < 5e-2, \
        f"{name}: mismatch max_abs={err:.4e} rel={rel:.4e}"


if __name__ == "__main__":
    embed_dim = 128
    num_heads = 4
    L, Lk, B = 16, 20, 2     # Lk=20 exercises the KV padding/masking path

    key = jax.random.PRNGKey(0)
    kparam, kq, kk, kv = jax.random.split(key, 4)
    params = init_multihead_attention_params(kparam, embed_dim)
    prepared = prepare_params(params, num_heads)

    x = jax.random.normal(kq, (L, B, embed_dim), jnp.float32)
    k = jax.random.normal(kk, (Lk, B, embed_dim), jnp.float32)
    v = jax.random.normal(kv, (Lk, B, embed_dim), jnp.float32)

    # 1) self-attention -> packed fused in-projection path
    out = jax.block_until_ready(multihead_attention_forward(prepared, x, x, x, num_heads))
    _check(out, _reference_forward(params, x, x, x, num_heads), "self-attention")

    # 2) shared k=v -> fused kv-projection path
    out = jax.block_until_ready(multihead_attention_forward(prepared, x, k, k, num_heads))
    _check(out, _reference_forward(params, x, k, k, num_heads), "kv-shared")

    # 3) fully distinct q/k/v -> separate projections + masked KV tail
    out = jax.block_until_ready(multihead_attention_forward(prepared, x, k, v, num_heads))
    _check(out, _reference_forward(params, x, k, v, num_heads), "cross-attention")

    print("KERNEL_OK")
</pallas_src>

<mosaic_0001>
module attributes {stable_mosaic.version = 11 : i64} {
  func.func @_linear_kernel(%arg0: i32, %arg1: i32, %arg2: i32, %arg3: memref<32x128xbf16, #tpu.memory_space<vmem>>, %arg4: memref<128x128xbf16, #tpu.memory_space<vmem>>, %arg5: memref<1x128xf32, #tpu.memory_space<vmem>>, %arg6: memref<32x128xbf16, #tpu.memory_space<vmem>>, %arg7: memref<32x128xf32, #tpu.memory_space<vmem>>) attributes {dimension_semantics = [#tpu.dimension_semantics<parallel>, #tpu.dimension_semantics<parallel>, #tpu.dimension_semantics<arbitrary>], iteration_bounds = array<i64: 1, 3, 1>, scalar_prefetch = 0 : i64, scratch_operands = 1 : i64, tpu.core_type = #tpu.core_type<tc>, window_params = [{transform_indices = @transform_0, window_bounds = array<i64: 32, 128>}, {transform_indices = @transform_1, window_bounds = array<i64: 128, 128>}, {transform_indices = @transform_2, window_bounds = array<i64: 1, 128>}, {transform_indices = @transform_3, window_bounds = array<i64: 32, 128>}]} {
    %c0_i32 = arith.constant 0 : i32
    %0 = arith.cmpi eq, %arg2, %c0_i32 : i32
    %1 = arith.extui %0 : i1 to i32
    %c0_i32_0 = arith.constant 0 : i32
    %2 = arith.cmpi ne, %1, %c0_i32_0 : i32
    scf.if %2 {
      %cst_10 = arith.constant 0.000000e+00 : f32
      %12 = vector.broadcast %cst_10 : f32 to vector<32x128xf32>
      %c0_11 = arith.constant 0 : index
      %c0_12 = arith.constant 0 : index
      %13 = vector.load %arg7[%c0_11, %c0_12] : memref<32x128xf32, #tpu.memory_space<vmem>>, vector<32x128xf32>
      tpu.vector_store %arg7[%c0_11, %c0_12], %12 {strides = array<i32>} : memref<32x128xf32, #tpu.memory_space<vmem>>, vector<32x128xf32>,
    } else {
    }
    %c0 = arith.constant 0 : index
    %c0_1 = arith.constant 0 : index
    %3 = vector.load %arg7[%c0, %c0_1] : memref<32x128xf32, #tpu.memory_space<vmem>>, vector<32x128xf32>
    %c0_2 = arith.constant 0 : index
    %c0_3 = arith.constant 0 : index
    %4 = vector.load %arg3[%c0_2, %c0_3] : memref<32x128xbf16, #tpu.memory_space<vmem>>, vector<32x128xbf16>
    %c0_4 = arith.constant 0 : index
    %c0_5 = arith.constant 0 : index
    %5 = vector.load %arg4[%c0_4, %c0_5] : memref<128x128xbf16, #tpu.memory_space<vmem>>, vector<128x128xbf16>
    %cst = arith.constant dense<0.000000e+00> : vector<32x128xf32>
    %6 = tpu.matmul %4, %5, %cst {dimension_numbers = #tpu.dot_dimension_numbers<[1], [0], [0], [1], [0, 0, 1, 1], [], []>} : vector<32x128xbf16>, vector<128x128xbf16>, vector<32x128xf32> -> vector<32x128xf32>
    %7 = arith.addf %3, %6 : vector<32x128xf32>
    %c0_6 = arith.constant 0 : index
    %c0_7 = arith.constant 0 : index
    %8 = vector.load %arg7[%c0_6, %c0_7] : memref<32x128xf32, #tpu.memory_space<vmem>>, vector<32x128xf32>
    tpu.vector_store %arg7[%c0_6, %c0_7], %7 {strides = array<i32>} : memref<32x128xf32, #tpu.memory_space<vmem>>, vector<32x128xf32>,
    %c0_i32_8 = arith.constant 0 : i32
    %9 = arith.cmpi eq, %arg2, %c0_i32_8 : i32
    %10 = arith.extui %9 : i1 to i32
    %c0_i32_9 = arith.constant 0 : i32
    %11 = arith.cmpi ne, %10, %c0_i32_9 : i32
    scf.if %11 {
      %c0_10 = arith.constant 0 : index
      %c0_11 = arith.constant 0 : index
      %12 = vector.load %arg7[%c0_10, %c0_11] : memref<32x128xf32, #tpu.memory_space<vmem>>, vector<32x128xf32>
      %c0_12 = arith.constant 0 : index
      %c0_13 = arith.constant 0 : index
      %13 = vector.load %arg5[%c0_12, %c0_13] : memref<1x128xf32, #tpu.memory_space<vmem>>, vector<1x128xf32>
      %14 = vector.broadcast %13 : vector<1x128xf32> to vector<32x128xf32>
      %15 = arith.addf %12, %14 : vector<32x128xf32>
      %16 = arith.truncf %15 : vector<32x128xf32> to vector<32x128xbf16>
      %c0_14 = arith.constant 0 : index
      %c0_15 = arith.constant 0 : index
      %17 = vector.load %arg6[%c0_14, %c0_15] : memref<32x128xbf16, #tpu.memory_space<vmem>>, vector<32x128xbf16>
      tpu.vector_store %arg6[%c0_14, %c0_15], %16 {strides = array<i32>} : memref<32x128xbf16, #tpu.memory_space<vmem>>, vector<32x128xbf16>,
    } else {
    }
    return
  }
  func.func @transform_0(%arg0: i32, %arg1: i32, %arg2: i32) -> (i32, i32) {
    %c0_i32 = arith.constant 0 : i32
    return %arg0, %arg2 : i32, i32
  }
  func.func @transform_1(%arg0: i32, %arg1: i32, %arg2: i32) -> (i32, i32) {
    %c0_i32 = arith.constant 0 : i32
    return %arg2, %arg1 : i32, i32
  }
  func.func @transform_2(%arg0: i32, %arg1: i32, %arg2: i32) -> (i32, i32) {
    %c0_i32 = arith.constant 0 : i32
    %c0_i32_0 = arith.constant 0 : i32
    return %c0_i32, %arg1 : i32, i32
  }
  func.func @transform_3(%arg0: i32, %arg1: i32, %arg2: i32) -> (i32, i32) {
    %c0_i32 = arith.constant 0 : i32
    return %arg0, %arg1 : i32, i32
  }
}

</mosaic_0001>

<llo_original>
// kernel: tpu_custom_call.1
$region0: #{tpu_custom_call.1}
  #allocation0 [shape = 'u32[]', space=smem, size = 0x4, offset = 0x4, fixed_abs, tag = 'smem constant byte address 0x4 - core index']
  #allocation1 [shape = 'u32[72,128]{1,0:T(1,128)}', space=vmem, size = 0x9000, scoped, tag = 'internal scratch']
  #allocation2 [shape = 'f32[32,128]{1,0:T(8,128)}', space=vmem, size = 0x4000, scoped, tag = 'scratch operand']
  %s0 = inlined_call_operand.hbm [shape: bf16[32,128], index: 0, kind: input, shape index: {}]
  %s1 = inlined_call_operand.hbm [shape: bf16[128,384], index: 1, kind: input, shape index: {}]
  %s2 = inlined_call_operand.hbm [shape: f32[1,384], index: 2, kind: input, shape index: {}]
  %s3 = inlined_call_operand.hbm [shape: bf16[32,384], index: 3, kind: output, shape index: {}]
  %s4 = sld [smem:[#allocation0]]
  $region65: #{tpu_custom_call.1} parent=0
    _
  %s6 = ssub.s32 1, %s4
  %s7 = scalar_select 0, %s6, %s4
  $region1: #{tpu_custom_call.1} parent=0
    #allocation3 [shape = 'u8[8192]{0}', space=vmem, size = 0x2000, scoped, tag = 'input window, operand 0, single buffered']
    #allocation4 [shape = 's32[2]{0}', space=sflag, size = 0x8, scoped, tag = 'scoped memory for tpu_custom_call.1']
    #allocation5 [shape = 's32[2]{0}', space=sflag, size = 0x8, scoped, tag = 'scoped memory for tpu_custom_call.1']
    #allocation6 [shape = 'u8[65536]{0}', space=vmem, size = 0x10000, scoped, tag = 'input window, operand 1']
    #allocation7 [shape = 's32[2]{0}', space=sflag, size = 0x8, scoped, tag = 'scoped memory for tpu_custom_call.1']
    #allocation8 [shape = 'u8[1024]{0}', space=vmem, size = 0x400, scoped, tag = 'input window, operand 2']
    #allocation9 [shape = 'u8[16384]{0}', space=vmem, size = 0x4000, scoped, tag = 'output window, operand 0']
    %8 = vsyncpa [#allocation4], 0
    %9 = vsyncpa [#allocation7], 0
    %s10 = scalar_lea.sflag [#allocation7], 1
    %11 = vsyncpa %s10, 0
    %12 = vsyncpa [#allocation5], 0
    %s13 = scalar_lea.sflag [#allocation5], 1
    %14 = vsyncpa %s13, 0
    loop: start=0, step=1, limit=5
    $region2: #{tpu_custom_call.1} parent=1 // loop_pre_header
      _
    $region3: #{tpu_custom_call.1} parent=1 // loop_header
      %s16 = sphi 0, %s20
      %p17 = scmp.ge.s32.totalorder %s16, 5
      %s23 = sphi 0, %s42
      %s24 = sphi 0, %s38
      %s25 = sphi 0, %s34
      %s26 = sphi 0, %s23
      %s27 = sphi 0, %s24
      %s28 = sphi 0, %s25
      %s29 = sphi 0, %s26
      %s30 = sphi 0, %s27
      %s31 = sphi 0, %s28
      %s47 = sphi 0, %s49
      %s50 = sphi 0, %s47
      %s51 = sphi 0, %s50
      %s67 = sphi 0, %s51
      %s75 = sphi 0, %s77
      %s78 = sphi 0, %s75
      %s79 = sphi 0, %s78
      %s95 = sphi 0, %s79
      %s101 = sphi 0, %s103
      %s104 = sphi 0, %s101
      %s105 = sphi 0, %s104
      %s121 = sphi 0, %s105
      %s129 = sphi 0, %s131
      %s132 = sphi 0, %s129
      %s133 = sphi 0, %s132
      %s149 = sphi 0, %s133
    $region4: #{tpu_custom_call.1} parent=1 // loop_header_branch
      %19 = sbr.rel (%p17) target = $region8
    $region5: #{tpu_custom_call.1} parent=1 // loop_body
      %s21 = ssub.s32 %s16, 1
      %s22 = ssub.s32 %s16, 2
      %s32 = sadd.s32 1, %s25
      %p33 = scmp.ge.s32.totalorder %s32, 1
      %s34 = scalar_select %p33, 0, %s32
      %s35 = sadd.s32 1, %s24
      %s36 = scalar_select %p33, %s35, %s24
      %p37 = scmp.ge.s32.totalorder %s36, 3
      %s38 = scalar_select %p37, 0, %s36
      %s39 = sadd.s32 1, %s23
      %s40 = scalar_select %p37, %s39, %s23
      %p41 = scmp.ge.s32.totalorder %s40, 1
      %s42 = scalar_select %p41, 0, %s40
      %s43 = ssub.s32 %s23, %s42
      %s44 = ssub.s32 %s25, %s34
      %s45 = sor.u32 %s43, %s44
      %p46 = scmp.eq.s32.totalorder %s45, 0
      %s48 = sadd.s32 %s47, 1
      %s49 = scalar_select %p46, %s47, %s48
      %p52 = pneg %p46
      %p53 = scmp.eq.s32.totalorder %s16, 2
      %p54 = por %p52, %p53
      %p55 = scmp.ne.s32.totalorder %s47, %s50
      %p56 = scmp.eq.s32.totalorder %s16, 0
      %p57 = por %p55, %p56
      %p58 = scmp.ne.s32.totalorder %s47, %s50
      %p59 = scmp.eq.s32.totalorder %s21, 2
      %p60 = por %p58, %p59
      %p61 = scmp.ne.s32.totalorder %s50, %s51
      %p62 = scmp.eq.s32.totalorder %s21, 0
      %p63 = por %p61, %p62
      %p64 = scmp.ne.s32.totalorder %s50, %s51
      %p65 = scmp.eq.s32.totalorder %s22, 2
      %p66 = por %p64, %p65
      %p68 = scmp.ne.s32.totalorder %s51, %s67
      %p69 = scmp.eq.s32.totalorder %s22, 0
      %p70 = por %p68, %p69
      %s71 = ssub.s32 %s25, %s34
      %s72 = ssub.s32 %s24, %s38
      %s73 = sor.u32 %s71, %s72
      %p74 = scmp.eq.s32.totalorder %s73, 0
      %s76 = sadd.s32 %s75, 1
      %s77 = scalar_select %p74, %s75, %s76
      %p80 = pneg %p74
      %p81 = scmp.eq.s32.totalorder %s16, 2
      %p82 = por %p80, %p81
      %p83 = scmp.ne.s32.totalorder %s75, %s78
      %p84 = scmp.eq.s32.totalorder %s16, 0
      %p85 = por %p83, %p84
      %p86 = scmp.ne.s32.totalorder %s75, %s78
      %p87 = scmp.eq.s32.totalorder %s21, 2
      %p88 = por %p86, %p87
      %p89 = scmp.ne.s32.totalorder %s78, %s79
      %p90 = scmp.eq.s32.totalorder %s21, 0
      %p91 = por %p89, %p90
      %p92 = scmp.ne.s32.totalorder %s78, %s79
      %p93 = scmp.eq.s32.totalorder %s22, 2
      %p94 = por %p92, %p93
      %p96 = scmp.ne.s32.totalorder %s79, %s95
      %p97 = scmp.eq.s32.totalorder %s22, 0
      %p98 = por %p96, %p97
      %s99 = ssub.s32 %s24, %s38
      %p100 = scmp.eq.s32.totalorder %s99, 0
      %s102 = sadd.s32 %s101, 1
      %s103 = scalar_select %p100, %s101, %s102
      %p106 = pneg %p100
      %p107 = scmp.eq.s32.totalorder %s16, 2
      %p108 = por %p106, %p107
      %p109 = scmp.ne.s32.totalorder %s101, %s104
      %p110 = scmp.eq.s32.totalorder %s16, 0
      %p111 = por %p109, %p110
      %p112 = scmp.ne.s32.totalorder %s101, %s104
      %p113 = scmp.eq.s32.totalorder %s21, 2
      %p114 = por %p112, %p113
      %p115 = scmp.ne.s32.totalorder %s104, %s105
      %p116 = scmp.eq.s32.totalorder %s21, 0
      %p117 = por %p115, %p116
      %p118 = scmp.ne.s32.totalorder %s104, %s105
      %p119 = scmp.eq.s32.totalorder %s22, 2
      %p120 = por %p118, %p119
      %p122 = scmp.ne.s32.totalorder %s105, %s121
      %p123 = scmp.eq.s32.totalorder %s22, 0
      %p124 = por %p122, %p123
      %s125 = ssub.s32 %s23, %s42
      %s126 = ssub.s32 %s24, %s38
      %s127 = sor.u32 %s125, %s126
      %p128 = scmp.eq.s32.totalorder %s127, 0
      %s130 = sadd.s32 %s129, 1
      %s131 = scalar_select %p128, %s129, %s130
      %p134 = pneg %p128
      %p135 = scmp.eq.s32.totalorder %s16, 2
      %p136 = por %p134, %p135
      %p137 = scmp.ne.s32.totalorder %s129, %s132
      %p138 = scmp.eq.s32.totalorder %s16, 0
      %p139 = por %p137, %p138
      %p140 = scmp.ne.s32.totalorder %s129, %s132
      %p141 = scmp.eq.s32.totalorder %s21, 2
      %p142 = por %p140, %p141
      %p143 = scmp.ne.s32.totalorder %s132, %s133
      %p144 = scmp.eq.s32.totalorder %s21, 0
      %p145 = por %p143, %p144
      %p146 = scmp.ne.s32.totalorder %s132, %s133
      %p147 = scmp.eq.s32.totalorder %s22, 2
      %p148 = por %p146, %p147
      %p150 = scmp.ne.s32.totalorder %s133, %s149
      %p151 = scmp.eq.s32.totalorder %s22, 0
      %p152 = por %p150, %p151
      %p153 = scmp.le.s32.totalorder 1, %s16
      %p154 = scmp.lt.s32.totalorder %s16, 4
      %p155 = pnand %p153, %p154
      %p156 = pneg %p155
      // Predicated region
      $region9: #{tpu_custom_call.1} parent=5 // pred_check
        _
      $region10: #{tpu_custom_call.1} parent=5 // pred_check_branch
        %158 = sbr.rel (%p155) target = $region12
      $region11: #{tpu_custom_call.1} parent=5 // pred_region
        %s159 = ssub.s32 %s16, 1
        // Predicated region
        $region13: #{tpu_custom_call.1} parent=11 // pred_check
          %p160 = pneg %p63
        $region14: #{tpu_custom_call.1} parent=11 // pred_check_branch
          %162 = sbr.rel (%p160) target = $region16
        $region15: #{tpu_custom_call.1} parent=11 // pred_region
          %s163 = smul.u32 4, %s26
          %165 = vsyncadd [#allocation4], 0
          %s166 = sadd.s32 %s28, %s163
          %s167 = smul.addr %s166, 4
          %s168 = scalar_lea.hbm %s0, %s167
          %s169 = sshll.u32 %s168, 4
          %s170 = int_to_ptr.hbm [resolvable:$true] %s169
          %s171 = sshll.u32 [#allocation3], 4
          %s172 = int_to_ptr.vmem [resolvable:$true] %s171
          %177 = dma.hbm_to_vmem [thread:$0]  %s170, 256, %s172, [#allocation4], 64, 64, 4
        $region16: #{tpu_custom_call.1} parent=11 // pred_fallthru
          _
      $region12: #{tpu_custom_call.1} parent=5 // pred_fallthru
        _
      %p178 = scmp.lt.s32.totalorder %s16, 3
      // Predicated region
      $region17: #{tpu_custom_call.1} parent=5 // pred_check
        %p179 = pneg %p178
      $region18: #{tpu_custom_call.1} parent=5 // pred_check_branch
        %181 = sbr.rel (%p179) target = $region20
      $region19: #{tpu_custom_call.1} parent=5 // pred_region
        // Predicated region
        $region21: #{tpu_custom_call.1} parent=19 // pred_check
          %p182 = pneg %p85
        $region22: #{tpu_custom_call.1} parent=19 // pred_check_branch
          %184 = sbr.rel (%p182) target = $region24
        $region23: #{tpu_custom_call.1} parent=19 // pred_region
          %s185 = sand.u32 %s16, 1
          %s186 = scalar_lea.sflag [#allocation7], %s185
          %s187 = sand.u32 %s75, 1
          %s188 = smul.addr %s187, 64
          %s189 = scalar_lea.vmem [#allocation6], %s188
          %s190 = smul.u32 16, %s25
          %192 = vsyncadd %s186, 0
          %s193 = smul.addr %s190, 3
          %s194 = sadd.s32 %s24, %s193
          %s195 = smul.addr %s194, 4
          %s196 = scalar_lea.hbm %s1, %s195
          %s197 = sshll.u32 %s196, 4
          %s198 = int_to_ptr.hbm [resolvable:$true] %s197
          %s199 = sshll.u32 %s189, 4
          %s200 = int_to_ptr.vmem [resolvable:$true] %s199
          %205 = dma.hbm_to_vmem [thread:$0]  %s198, 1024, %s200, %s186, 192, 64, 4
        $region24: #{tpu_custom_call.1} parent=19 // pred_fallthru
          _
        // Predicated region
        $region25: #{tpu_custom_call.1} parent=19 // pred_check
          %p206 = pneg %p111
        $region26: #{tpu_custom_call.1} parent=19 // pred_check_branch
          %208 = sbr.rel (%p206) target = $region28
        $region27: #{tpu_custom_call.1} parent=19 // pred_region
          %s209 = sand.u32 %s16, 1
          %s210 = scalar_lea.sflag [#allocation7], %s209
          %s211 = sand.u32 %s101, 1
          %s212 = scalar_lea.vmem [#allocation8], %s211
          %214 = vsyncadd %s210, 0
          %s215 = scalar_lea.hbm %s2, %s24
          %s217 = sshll.u32 %s215, 4
          %s218 = int_to_ptr.hbm [resolvable:$true] %s217
          %s219 = sshll.u32 %s212, 4
          %s220 = int_to_ptr.vmem [resolvable:$true] %s219
          %222 = dma.hbm_to_vmem [thread:$0]  %s218, 16, %s220, %s210
        $region28: #{tpu_custom_call.1} parent=19 // pred_fallthru
          _
      $region20: #{tpu_custom_call.1} parent=5 // pred_fallthru
        _
      %p223 = scmp.le.s32.totalorder 1, %s16
      %p224 = scmp.lt.s32.totalorder %s16, 4
      %p225 = pnand %p223, %p224
      %p226 = pneg %p225
      // Predicated region
      $region29: #{tpu_custom_call.1} parent=5 // pred_check
        _
      $region30: #{tpu_custom_call.1} parent=5 // pred_check_branch
        %228 = sbr.rel (%p225) target = $region32
      $region31: #{tpu_custom_call.1} parent=5 // pred_region
        %s229 = ssub.s32 %s16, 1
        // Predicated region
        $region33: #{tpu_custom_call.1} parent=31 // pred_check
          %p230 = pneg %p63
        $region34: #{tpu_custom_call.1} parent=31 // pred_check_branch
          %232 = sbr.rel (%p230) target = $region36
        $region35: #{tpu_custom_call.1} parent=31 // pred_region
          %234 = dma.done [#allocation4], 256
        $region36: #{tpu_custom_call.1} parent=31 // pred_fallthru
          _
        %s235 = sand.u32 %s21, 1
        %s236 = scalar_lea.sflag [#allocation7], %s235
        %s237 = sand.u32 %s78, 1
        %s238 = smul.addr %s237, 64
        %s239 = scalar_lea.vmem [#allocation6], %s238
        // Predicated region
        $region37: #{tpu_custom_call.1} parent=31 // pred_check
          %p240 = pneg %p91
        $region38: #{tpu_custom_call.1} parent=31 // pred_check_branch
          %242 = sbr.rel (%p240) target = $region40
        $region39: #{tpu_custom_call.1} parent=31 // pred_region
          %244 = dma.done %s236, 1024
        $region40: #{tpu_custom_call.1} parent=31 // pred_fallthru
          _
        %s245 = sand.u32 %s21, 1
        %s246 = scalar_lea.sflag [#allocation7], %s245
        %s247 = sand.u32 %s104, 1
        %s248 = scalar_lea.vmem [#allocation8], %s247
        // Predicated region
        $region41: #{tpu_custom_call.1} parent=31 // pred_check
          %p249 = pneg %p117
        $region42: #{tpu_custom_call.1} parent=31 // pred_check_branch
          %251 = sbr.rel (%p249) target = $region44
        $region43: #{tpu_custom_call.1} parent=31 // pred_region
          %253 = dma.done %s246, 16
        $region44: #{tpu_custom_call.1} parent=31 // pred_fallthru
          _
        %p254 = pneg %p63
        %p255 = pneg %p60
        %s256 = sand.u32 %s21, 1
        %s257 = scalar_lea.sflag [#allocation7], %s256
        %s258 = sand.u32 %s78, 1
        %s259 = smul.addr %s258, 64
        %s260 = scalar_lea.vmem [#allocation6], %s259
        %p261 = pneg %p91
        %p262 = pneg %p88
        %s263 = sand.u32 %s21, 1
        %s264 = scalar_lea.sflag [#allocation7], %s263
        %s265 = sand.u32 %s104, 1
        %s266 = scalar_lea.vmem [#allocation8], %s265
        %p267 = pneg %p117
        %p268 = pneg %p114
        %p269 = pneg %p145
        %p270 = pneg %p142
        %s271 = sand.u32 %s132, 1
        %s272 = scalar_lea.sflag [#allocation5], %s271
        %s273 = sand.u32 %s132, 1
        %s274 = smul.addr %s273, 16
        %s275 = scalar_lea.vmem [#allocation9], %s274
        %s276 = smul.u32 4, %s26
        %s277 = smul.u32 16, %s28
        %s278 = smul.u32 4, %s26
        %p279 = scmp.eq.s32.totalorder %s28, 0
        // Predicated region
        $region45: #{tpu_custom_call.1} parent=31 // pred_check
          %p280 = pneg %p279
        $region46: #{tpu_custom_call.1} parent=31 // pred_check_branch
          %282 = sbr.rel (%p280) target = $region48
        $region47: #{tpu_custom_call.1} parent=31 // pred_region
          %283 = vst [vmem:[#allocation2] sm:$0xff] 0.0
          %284 = vst [vmem:[#allocation2 + $0x8] sm:$0xff] 0.0
          %285 = vst [vmem:[#allocation2 + $0x10] sm:$0xff] 0.0
          %286 = vst [vmem:[#allocation2 + $0x18] sm:$0xff] 0.0
        $region48: #{tpu_custom_call.1} parent=31 // pred_fallthru
          _
        %v287 = vld [vmem:[#allocation2] sm:$0xff]
        %v288 = vld [vmem:[#allocation2 + $0x8] sm:$0xff]
        %v289 = vld [vmem:[#allocation2 + $0x10] sm:$0xff]
        %v290 = vld [vmem:[#allocation2 + $0x18] sm:$0xff]
        %v291 = vld [vmem:[#allocation3] sm:$0xf]
        %v292 = vld [vmem:[#allocation3 + $0x4] sm:$0xf]
        %v293 = vld [vmem:[#allocation3 + $0x8] sm:$0xf]
        %v294 = vld [vmem:[#allocation3 + $0xc] sm:$0xf]
        %v295 = vld [vmem:[%s239] sm:$0xf]
        %v296 = vld [vmem:[%s239 + $0x4] sm:$0xf]
        %v297 = vld [vmem:[%s239 + $0x8] sm:$0xf]
        %v298 = vld [vmem:[%s239 + $0xc] sm:$0xf]
        %v299 = vld [vmem:[%s239 + $0x10] sm:$0xf]
        %v300 = vld [vmem:[%s239 + $0x14] sm:$0xf]
        %v301 = vld [vmem:[%s239 + $0x18] sm:$0xf]
        %v302 = vld [vmem:[%s239 + $0x1c] sm:$0xf]
        %v303 = vld [vmem:[%s239 + $0x20] sm:$0xf]
        %v304 = vld [vmem:[%s239 + $0x24] sm:$0xf]
        %v305 = vld [vmem:[%s239 + $0x28] sm:$0xf]
        %v306 = vld [vmem:[%s239 + $0x2c] sm:$0xf]
        %v307 = vld [vmem:[%s239 + $0x30] sm:$0xf]
        %v308 = vld [vmem:[%s239 + $0x34] sm:$0xf]
        %v309 = vld [vmem:[%s239 + $0x38] sm:$0xf]
        %v310 = vld [vmem:[%s239 + $0x3c] sm:$0xf]
        %v315 = vunpack.c.l.b16 %v291
        %v316 = vunpack.c.l.b16 %v292
        %v317 = vunpack.c.l.b16 %v293
        %v318 = vunpack.c.l.b16 %v294
        %v319 = vpack.c.b16 %v316, %v315
        %v320 = vpack.c.b16 %v318, %v317
        %v339 = vunpack.c.l.b16 %v295
        %v340 = vunpack.c.l.b16 %v296
        %v341 = vunpack.c.l.b16 %v297
        %v342 = vunpack.c.l.b16 %v298
        %v343 = vunpack.c.l.b16 %v299
        %v344 = vunpack.c.l.b16 %v300
        %v345 = vunpack.c.l.b16 %v301
        %v346 = vunpack.c.l.b16 %v302
        %v347 = vunpack.c.l.b16 %v303
        %v348 = vunpack.c.l.b16 %v304
        %v349 = vunpack.c.l.b16 %v305
        %v350 = vunpack.c.l.b16 %v306
        %v351 = vunpack.c.l.b16 %v307
        %v352 = vunpack.c.l.b16 %v308
        %v353 = vunpack.c.l.b16 %v309
        %v354 = vunpack.c.l.b16 %v310
        %v355 = vpack.c.b16 %v340, %v339
        %v356 = vpack.c.b16 %v342, %v341
        %v357 = vpack.c.b16 %v344, %v343
        %v358 = vpack.c.b16 %v346, %v345
        %v359 = vpack.c.b16 %v348, %v347
        %v360 = vpack.c.b16 %v350, %v349
        %v361 = vpack.c.b16 %v352, %v351
        %v362 = vpack.c.b16 %v354, %v353
        %371 = vmatpush.bf16.msra.mxu0 %v362
        %372 = vmatpush.bf16.msra.mxu0 %v361
        %373 = vmatpush.bf16.msra.mxu0 %v360
        %374 = vmatpush.bf16.msra.mxu0 %v359
        %375 = vmatpush.bf16.msra.mxu0 %v358
        %376 = vmatpush.bf16.msra.mxu0 %v357
        %377 = vmatpush.bf16.msra.mxu0 %v356
        %378 = vmatpush.bf16.msra.mxu0 %v355
        %379 = vmatmul.bf16.gmra.mxu0 %v319
        %v380 = vpop.f32.mrf.mxu0
        %v381 = vadd.f32 0.0, %v380
        %v382 = vpop.f32.mrf.mxu0
        %v383 = vadd.f32 0.0, %v382
        %384 = vmatmul.bf16.gmra.mxu0 %v320
        %v385 = vpop.f32.mrf.mxu0
        %v386 = vadd.f32 0.0, %v385
        %v387 = vpop.f32.mrf.mxu0
        %v388 = vadd.f32 0.0, %v387
        %389 = vdwg.mxu0
        %v390 = vadd.f32 %v287, %v381
        %v391 = vadd.f32 %v288, %v383
        %v392 = vadd.f32 %v289, %v386
        %v393 = vadd.f32 %v290, %v388
        %394 = vst [vmem:[#allocation2] sm:$0xff] %v390
        %395 = vst [vmem:[#allocation2 + $0x8] sm:$0xff] %v391
        %396 = vst [vmem:[#allocation2 + $0x10] sm:$0xff] %v392
        %397 = vst [vmem:[#allocation2 + $0x18] sm:$0xff] %v393
        // Predicated region
        $region49: #{tpu_custom_call.1} parent=31 // pred_check
          %p398 = pneg %p279
        $region50: #{tpu_custom_call.1} parent=31 // pred_check_branch
          %400 = sbr.rel (%p398) target = $region52
        $region51: #{tpu_custom_call.1} parent=31 // pred_region
          %v401 = vld [vmem:[#allocation2] sm:$0xff]
          %v402 = vld [vmem:[#allocation2 + $0x8] sm:$0xff]
          %v403 = vld [vmem:[#allocation2 + $0x10] sm:$0xff]
          %v404 = vld [vmem:[#allocation2 + $0x18] sm:$0xff]
          %v405 = vld [vmem:[%s248] sm:$0x1]
          %v407 = vperm.slane %v405, 0
          %v409 = vadd.f32 %v401, %v407
          %v410 = vadd.f32 %v402, %v407
          %v411 = vadd.f32 %v403, %v407
          %v412 = vadd.f32 %v404, %v407
          %v413 = vpack.c.bf16 %v409, %v409
          %v414 = vpack.c.bf16 %v410, %v410
          %v415 = vpack.c.bf16 %v411, %v411
          %v416 = vpack.c.bf16 %v412, %v412
          %417 = vst [vmem:[%s275] sm:$0xf] %v413
          %418 = vst [vmem:[%s275 + $0x4] sm:$0xf] %v414
          %419 = vst [vmem:[%s275 + $0x8] sm:$0xf] %v415
          %420 = vst [vmem:[%s275 + $0xc] sm:$0xf] %v416
        $region52: #{tpu_custom_call.1} parent=31 // pred_fallthru
          _
        %s421 = sand.u32 %s132, 1
        %s422 = scalar_lea.sflag [#allocation5], %s421
        %s423 = sand.u32 %s132, 1
        %s424 = smul.addr %s423, 16
        %s425 = scalar_lea.vmem [#allocation9], %s424
        // Predicated region
        $region53: #{tpu_custom_call.1} parent=31 // pred_check
          %p426 = pneg %p142
        $region54: #{tpu_custom_call.1} parent=31 // pred_check_branch
          %428 = sbr.rel (%p426) target = $region56
        $region55: #{tpu_custom_call.1} parent=31 // pred_region
          %s429 = smul.u32 4, %s26
          %431 = vsyncadd %s422, 0
          %s432 = smul.addr %s429, 3
          %s433 = sadd.s32 %s27, %s432
          %s434 = smul.addr %s433, 4
          %s435 = scalar_lea.hbm %s3, %s434
          %s436 = sshll.u32 %s425, 4
          %s437 = int_to_ptr.vmem [resolvable:$true] %s436
          %s438 = sshll.u32 %s435, 4
          %s439 = int_to_ptr.hbm [resolvable:$true] %s438
          %444 = dma.vmem_to_hbm [thread:$0]  %s437, 256, %s439, %s422, 64, 192, 4
        $region56: #{tpu_custom_call.1} parent=31 // pred_fallthru
          _
      $region32: #{tpu_custom_call.1} parent=5 // pred_fallthru
        _
      %p445 = scmp.le.s32.totalorder 2, %s16
      // Predicated region
      $region57: #{tpu_custom_call.1} parent=5 // pred_check
        %p446 = pneg %p445
      $region58: #{tpu_custom_call.1} parent=5 // pred_check_branch
        %448 = sbr.rel (%p446) target = $region60
      $region59: #{tpu_custom_call.1} parent=5 // pred_region
        %s449 = ssub.s32 %s16, 2
        // Predicated region
        $region61: #{tpu_custom_call.1} parent=59 // pred_check
          %p450 = pneg %p148
        $region62: #{tpu_custom_call.1} parent=59 // pred_check_branch
          %452 = sbr.rel (%p450) target = $region64
        $region63: #{tpu_custom_call.1} parent=59 // pred_region
          %s453 = sand.u32 %s133, 1
          %s454 = scalar_lea.sflag [#allocation5], %s453
          %s455 = sand.u32 %s133, 1
          %s456 = smul.addr %s455, 16
          %s457 = scalar_lea.vmem [#allocation9], %s456
          %459 = dma.done %s454, 256
        $region64: #{tpu_custom_call.1} parent=59 // pred_fallthru
          _
      $region60: #{tpu_custom_call.1} parent=5 // pred_fallthru
        _
    $region6: #{tpu_custom_call.1} parent=1 // loop_footer
      %s20 = sadd.s32 1, %s16
    $region7: #{tpu_custom_call.1} parent=1 // loop_footer_branch
      %15 = sbr.rel target = $region3
    $region8: #{tpu_custom_call.1} parent=1 // loop_exit
      _
    %460 = vsyncpa [#allocation4], 1
    %s461 = scalar_lea.sflag [#allocation4], 1
    %462 = vsyncpa %s461, 1
    %463 = vsyncpa [#allocation7], 1
    %s464 = scalar_lea.sflag [#allocation7], 1
    %465 = vsyncpa %s464, 1
    %466 = vsyncpa [#allocation5], 1
    %s467 = scalar_lea.sflag [#allocation5], 1
    %468 = vsyncpa %s467, 1

</llo_original>
